<compile_context>
chip_gen: v7x
topology: tpu7x:2x2x1
jax: 0.10.0
libtpu: 0.0.40
codegen_flags: <defaults>
</compile_context>

<pallas_src>
import jax
import jax.numpy as jnp
from jax.experimental import pallas as pl
from jax.experimental.pallas import tpu as pltpu


def _pick_batch_block(B, per_elem_macs, min_macs_per_step=1 << 18):
    """Batch elements per grid step.

    Grow the block while each step is still below the work target, but always keep
    >= 2 grid steps when B allows it (v7x megacore: 2 TensorCores need >= 2 parallel
    steps; on v5e/v6e the grid is just a loop so this costs nothing).
    """
    b_blk = 1
    while (b_blk * per_elem_macs < min_macs_per_step
           and B % (2 * b_blk) == 0
           and B // (2 * b_blk) >= 2):
        b_blk *= 2
    return b_blk


def cheb_conv_forward(x_bnft, cheb_polys, theta, *, compute_dtype=jnp.bfloat16):
    """x_bnft: (B, N, F_in, T); cheb_polys: (K, N, N); theta: (K, F_in, F_out)."""
    B, N, F_in, T = x_bnft.shape
    K, _, F_out = theta.shape
    FI_T, FO_T = F_in * T, F_out * T

    # ---- operand prep (metadata-only or tiny; no large HBM intermediates) --------
    # x laid out (B, N, F_in*T): contiguous reshape, columns ordered (f, t).
    x2 = x_bnft.reshape(B, N, FI_T).astype(compute_dtype)
    # Stacked *transposed* Chebyshev polynomials: pT[k, n, m] = T_k[m, n].
    pT = jnp.transpose(cheb_polys, (0, 2, 1)).astype(compute_dtype)
    # Theta expanded block-diagonally over time so the F_in->F_out projection is one
    # MXU matmul per (k, b) with output columns already in (F_out, T) order:
    #   thetaT[k, f*T + t, o*T + u] = theta[k, f, o] * (t == u)
    thetaT = jnp.einsum('kfo,tu->kftou', theta, jnp.eye(T, dtype=theta.dtype))
    thetaT = thetaT.reshape(K, FI_T, FO_T).astype(compute_dtype)

    # ---- grid plan ----------------------------------------------------------------
    per_elem_macs = K * (N * N * FI_T + N * FI_T * FO_T)
    B_blk = _pick_batch_block(B, per_elem_macs)
    grid = (B // B_blk,)

    # ---- kernel -------------------------------------------------------------------
    def kernel(pT_ref, thetaT_ref, x_ref, o_ref):
        # pT_ref:     (K, N, N)            pT_ref[k, n, m] = T_k[m, n]        (bf16)
        # thetaT_ref: (K, F_in*T, F_out*T) time-block-diagonal Theta          (bf16)
        # x_ref:      (B_blk, N, F_in*T)   x[b, n, f*T + t]                   (bf16)
        # o_ref:      (B_blk, N, F_out*T)  relu(out)[b, n, o*T + t]           (f32)
        for b in range(B_blk):                       # static, unrolled
            xb = x_ref[b]                            # (N, F_in*T)
            acc = jnp.zeros((N, FO_T), jnp.float32)  # f32 accumulator over k
            for k in range(K):                       # static, unrolled (K is small)
                # Spatial (graph) contraction FIRST: columns are F_in*T, which is
                # F_out/F_in cheaper than projecting to F_out before the graph matmul.
                yk = jnp.dot(pT_ref[k], xb, preferred_element_type=jnp.float32)
                # Theta projection: lane-dense output columns (F_out, T).
                acc = acc + jnp.dot(yk.astype(xb.dtype), thetaT_ref[k],
                                    preferred_element_type=jnp.float32)
            o_ref[b] = jnp.maximum(acc, 0.0).astype(o_ref.dtype)   # ReLU after k-sum

    # ---- VMEM budget / cost hint ---------------------------------------------------
    elt = jnp.dtype(compute_dtype).itemsize
    vmem_need = (pT.size + thetaT.size) * elt * 2        # constants (default 2 buffers)
    vmem_need += 2 * B_blk * N * FI_T * elt              # x block, double-buffered
    vmem_need += 2 * B_blk * N * FO_T * 4                # out block (f32), double-buffered
    vmem_need += 4 * N * FO_T * 4                        # accumulator / intermediates slack
    vmem_limit = int(min(100 * 2**20, max(16 * 2**20, 2 * vmem_need)))

    cost = pl.CostEstimate(
        flops=2 * B * per_elem_macs,
        transcendentals=0,
        bytes_accessed=(x2.size + pT.size + thetaT.size) * elt + B * N * FO_T * 4,
    )

    out_flat = pl.pallas_call(
        kernel,
        out_shape=jax.ShapeDtypeStruct((B, N, FO_T), jnp.float32),
        grid_spec=pltpu.PrefetchScalarGridSpec(
            num_scalar_prefetch=0,
            grid=grid,
            in_specs=[
                # constants: same block every step (DMA'd once; see TODO above about
                # single-buffering them at real graph sizes)
                pl.BlockSpec((K, N, N), lambda i: (0, 0, 0)),
                pl.BlockSpec((K, FI_T, FO_T), lambda i: (0, 0, 0)),
                # streaming input: one batch block per grid step
                pl.BlockSpec((B_blk, N, FI_T), lambda i: (i, 0, 0)),
            ],
            out_specs=pl.BlockSpec((B_blk, N, FO_T), lambda i: (i, 0, 0)),
        ),
        compiler_params=pltpu.CompilerParams(
            dimension_semantics=("parallel",),
            vmem_limit_bytes=vmem_limit),
        cost_estimate=cost,
    )(pT, thetaT, x2)

    # (B, N, F_out*T) -> (B, N, F_out, T): metadata-only reshape, no transpose pass.
    return out_flat.reshape(B, N, F_out, T)


# ---------------- glue: graph / polynomial / parameter construction ----------------

def build_L_tilde(key, N):
    """Deterministic synthetic Laplacian, rescaled to ~[-1, 1] (Gershgorin bound) so
    the elementwise Chebyshev recurrence of the reference code stays well-conditioned."""
    a = jax.random.uniform(key, (N, N), dtype=jnp.float32)
    a = 0.5 * (a + a.T) * (1.0 - jnp.eye(N, dtype=jnp.float32))   # symmetric, zero diag
    d = jnp.sum(a, axis=1)
    L = jnp.diag(d) - a
    lam_max = 2.0 * jnp.max(d)
    return (2.0 * L) / lam_max - jnp.eye(N, dtype=jnp.float32)


def cheb_polynomials_jax(L_tilde, K):
    """Matches cheb_polynomial_torch exactly (note: ELEMENTWISE recurrence, as written
    in the PyTorch reference)."""
    N = L_tilde.shape[0]
    polys = [jnp.eye(N, dtype=L_tilde.dtype), L_tilde]
    for i in range(2, K):
        polys.append(2.0 * L_tilde * polys[i - 1] - polys[i - 2])
    return jnp.stack(polys[:K], axis=0)


def reference_forward(x, cheb_polys, theta):
    """Pure-JAX f32 reference mirroring the PyTorch loops."""
    B, N, F_in, T = x.shape
    K, _, F_out = theta.shape
    outs = []
    for t in range(T):
        gs = x[:, :, :, t]                                   # (B, N, F_in)
        acc = jnp.zeros((B, N, F_out), jnp.float32)
        for k in range(K):
            rhs = jnp.einsum('bmf,mn->bnf', gs, cheb_polys[k])
            acc = acc + jnp.einsum('bnf,fo->bno', rhs, theta[k])
        outs.append(acc[..., None])
    return jax.nn.relu(jnp.concatenate(outs, axis=-1))


if __name__ == "__main__":
    # Small shapes consistent with the module's forward: x (B, N, F_in, T)
    B, N, F_in, F_out, T, K = 2, 16, 4, 8, 8, 3

    key = jax.random.PRNGKey(0)
    k_x, k_adj, k_theta = jax.random.split(key, 3)

    x = jax.random.normal(k_x, (B, N, F_in, T), dtype=jnp.float32)
    L_tilde = build_L_tilde(k_adj, N)
    cheb_polys = cheb_polynomials_jax(L_tilde, K)            # (K, N, N)
    # nn.Parameter(torch.FloatTensor(in, out)) is uninitialized in the module;
    # use a deterministic normal init here.
    theta = 0.1 * jax.random.normal(k_theta, (K, F_in, F_out), dtype=jnp.float32)

    fwd = jax.jit(cheb_conv_forward)
    out = jax.block_until_ready(fwd(x, cheb_polys, theta))
    assert out.shape == (B, N, F_out, T)

    ref = reference_forward(x, cheb_polys, theta)
    # bf16 MXU operands with f32 accumulation -> compare with a normalized tolerance.
    rel_err = float(jnp.max(jnp.abs(out - ref)) / (jnp.max(jnp.abs(ref)) + 1e-6))
    assert rel_err < 3e-2, f"mismatch vs reference: rel err {rel_err}"

    print("KERNEL_OK")
</pallas_src>

<mosaic_0001>
module attributes {stable_mosaic.version = 11 : i64} {
  func.func @kernel(%arg0: i32, %arg1: memref<3x16x16xbf16, #tpu.memory_space<vmem>>, %arg2: memref<3x32x64xbf16, #tpu.memory_space<vmem>>, %arg3: memref<1x16x32xbf16, #tpu.memory_space<vmem>>, %arg4: memref<1x16x64xf32, #tpu.memory_space<vmem>>) attributes {dimension_semantics = [#tpu.dimension_semantics<parallel>], iteration_bounds = array<i64: 2>, scalar_prefetch = 0 : i64, scratch_operands = 0 : i64, tpu.core_type = #tpu.core_type<tc>, window_params = [{pipeline_mode = #tpu.pipeline_mode<synchronous>, transform_indices = @transform_0, window_bounds = array<i64: 3, 16, 16>}, {pipeline_mode = #tpu.pipeline_mode<synchronous>, transform_indices = @transform_1, window_bounds = array<i64: 3, 32, 64>}, {transform_indices = @transform_2, window_bounds = array<i64: 1, 16, 32>}, {transform_indices = @transform_3, window_bounds = array<i64: 1, 16, 64>}]} {
    %c0 = arith.constant 0 : index
    %c0_0 = arith.constant 0 : index
    %c0_1 = arith.constant 0 : index
    %0 = vector.load %arg3[%c0, %c0_0, %c0_1] : memref<1x16x32xbf16, #tpu.memory_space<vmem>>, vector<1x16x32xbf16>
    %1 = vector.shape_cast %0 : vector<1x16x32xbf16> to vector<16x32xbf16>
    %cst = arith.constant 0.000000e+00 : f32
    %2 = vector.broadcast %cst : f32 to vector<16x64xf32>
    %c0_2 = arith.constant 0 : index
    %c0_3 = arith.constant 0 : index
    %c0_4 = arith.constant 0 : index
    %3 = vector.load %arg1[%c0_2, %c0_3, %c0_4] : memref<3x16x16xbf16, #tpu.memory_space<vmem>>, vector<1x16x16xbf16>
    %4 = vector.shape_cast %3 : vector<1x16x16xbf16> to vector<16x16xbf16>
    %cst_5 = arith.constant dense<0.000000e+00> : vector<16x32xf32>
    %5 = tpu.matmul %4, %1, %cst_5 {dimension_numbers = #tpu.dot_dimension_numbers<[1], [0], [0], [1], [0, 0, 1, 1], [], []>} : vector<16x16xbf16>, vector<16x32xbf16>, vector<16x32xf32> -> vector<16x32xf32>
    %6 = arith.truncf %5 : vector<16x32xf32> to vector<16x32xbf16>
    %c0_6 = arith.constant 0 : index
    %c0_7 = arith.constant 0 : index
    %c0_8 = arith.constant 0 : index
    %7 = vector.load %arg2[%c0_6, %c0_7, %c0_8] : memref<3x32x64xbf16, #tpu.memory_space<vmem>>, vector<1x32x64xbf16>
    %8 = vector.shape_cast %7 : vector<1x32x64xbf16> to vector<32x64xbf16>
    %cst_9 = arith.constant dense<0.000000e+00> : vector<16x64xf32>
    %9 = tpu.matmul %6, %8, %cst_9 {dimension_numbers = #tpu.dot_dimension_numbers<[1], [0], [0], [1], [0, 0, 1, 1], [], []>} : vector<16x32xbf16>, vector<32x64xbf16>, vector<16x64xf32> -> vector<16x64xf32>
    %10 = arith.addf %2, %9 : vector<16x64xf32>
    %c1 = arith.constant 1 : index
    %c0_10 = arith.constant 0 : index
    %c0_11 = arith.constant 0 : index
    %11 = vector.load %arg1[%c1, %c0_10, %c0_11] : memref<3x16x16xbf16, #tpu.memory_space<vmem>>, vector<1x16x16xbf16>
    %12 = vector.shape_cast %11 : vector<1x16x16xbf16> to vector<16x16xbf16>
    %cst_12 = arith.constant dense<0.000000e+00> : vector<16x32xf32>
    %13 = tpu.matmul %12, %1, %cst_12 {dimension_numbers = #tpu.dot_dimension_numbers<[1], [0], [0], [1], [0, 0, 1, 1], [], []>} : vector<16x16xbf16>, vector<16x32xbf16>, vector<16x32xf32> -> vector<16x32xf32>
    %14 = arith.truncf %13 : vector<16x32xf32> to vector<16x32xbf16>
    %c1_13 = arith.constant 1 : index
    %c0_14 = arith.constant 0 : index
    %c0_15 = arith.constant 0 : index
    %15 = vector.load %arg2[%c1_13, %c0_14, %c0_15] : memref<3x32x64xbf16, #tpu.memory_space<vmem>>, vector<1x32x64xbf16>
    %16 = vector.shape_cast %15 : vector<1x32x64xbf16> to vector<32x64xbf16>
    %cst_16 = arith.constant dense<0.000000e+00> : vector<16x64xf32>
    %17 = tpu.matmul %14, %16, %cst_16 {dimension_numbers = #tpu.dot_dimension_numbers<[1], [0], [0], [1], [0, 0, 1, 1], [], []>} : vector<16x32xbf16>, vector<32x64xbf16>, vector<16x64xf32> -> vector<16x64xf32>
    %18 = arith.addf %10, %17 : vector<16x64xf32>
    %c2 = arith.constant 2 : index
    %c0_17 = arith.constant 0 : index
    %c0_18 = arith.constant 0 : index
    %19 = vector.load %arg1[%c2, %c0_17, %c0_18] : memref<3x16x16xbf16, #tpu.memory_space<vmem>>, vector<1x16x16xbf16>
    %20 = vector.shape_cast %19 : vector<1x16x16xbf16> to vector<16x16xbf16>
    %cst_19 = arith.constant dense<0.000000e+00> : vector<16x32xf32>
    %21 = tpu.matmul %20, %1, %cst_19 {dimension_numbers = #tpu.dot_dimension_numbers<[1], [0], [0], [1], [0, 0, 1, 1], [], []>} : vector<16x16xbf16>, vector<16x32xbf16>, vector<16x32xf32> -> vector<16x32xf32>
    %22 = arith.truncf %21 : vector<16x32xf32> to vector<16x32xbf16>
    %c2_20 = arith.constant 2 : index
    %c0_21 = arith.constant 0 : index
    %c0_22 = arith.constant 0 : index
    %23 = vector.load %arg2[%c2_20, %c0_21, %c0_22] : memref<3x32x64xbf16, #tpu.memory_space<vmem>>, vector<1x32x64xbf16>
    %24 = vector.shape_cast %23 : vector<1x32x64xbf16> to vector<32x64xbf16>
    %cst_23 = arith.constant dense<0.000000e+00> : vector<16x64xf32>
    %25 = tpu.matmul %22, %24, %cst_23 {dimension_numbers = #tpu.dot_dimension_numbers<[1], [0], [0], [1], [0, 0, 1, 1], [], []>} : vector<16x32xbf16>, vector<32x64xbf16>, vector<16x64xf32> -> vector<16x64xf32>
    %26 = arith.addf %18, %25 : vector<16x64xf32>
    %cst_24 = arith.constant 0.000000e+00 : f32
    %27 = vector.broadcast %cst_24 : f32 to vector<16x64xf32>
    %28 = arith.maximumf %26, %27 : vector<16x64xf32>
    %c0_25 = arith.constant 0 : index
    %c0_26 = arith.constant 0 : index
    %c0_27 = arith.constant 0 : index
    %29 = vector.load %arg4[%c0_25, %c0_26, %c0_27] : memref<1x16x64xf32, #tpu.memory_space<vmem>>, vector<1x16x64xf32>
    %30 = vector.shape_cast %29 : vector<1x16x64xf32> to vector<16x64xf32>
    %31 = vector.shape_cast %28 : vector<16x64xf32> to vector<1x16x64xf32>
    tpu.vector_store %arg4[%c0_25, %c0_26, %c0_27], %31 {strides = array<i32>} : memref<1x16x64xf32, #tpu.memory_space<vmem>>, vector<1x16x64xf32>,
    return
  }
  func.func @transform_0(%arg0: i32) -> (i32, i32, i32) {
    %c0_i32 = arith.constant 0 : i32
    %c0_i32_0 = arith.constant 0 : i32
    %c0_i32_1 = arith.constant 0 : i32
    %c0_i32_2 = arith.constant 0 : i32
    return %c0_i32, %c0_i32_0, %c0_i32_1 : i32, i32, i32
  }
  func.func @transform_1(%arg0: i32) -> (i32, i32, i32) {
    %c0_i32 = arith.constant 0 : i32
    %c0_i32_0 = arith.constant 0 : i32
    %c0_i32_1 = arith.constant 0 : i32
    %c0_i32_2 = arith.constant 0 : i32
    return %c0_i32, %c0_i32_0, %c0_i32_1 : i32, i32, i32
  }
  func.func @transform_2(%arg0: i32) -> (i32, i32, i32) {
    %c0_i32 = arith.constant 0 : i32
    %c0_i32_0 = arith.constant 0 : i32
    %c0_i32_1 = arith.constant 0 : i32
    return %arg0, %c0_i32, %c0_i32_0 : i32, i32, i32
  }
  func.func @transform_3(%arg0: i32) -> (i32, i32, i32) {
    %c0_i32 = arith.constant 0 : i32
    %c0_i32_0 = arith.constant 0 : i32
    %c0_i32_1 = arith.constant 0 : i32
    return %arg0, %c0_i32, %c0_i32_0 : i32, i32, i32
  }
}

</mosaic_0001>

<llo_original>
// kernel: cheb_conv_forward.1
$region0: #{cheb_conv_forward.1}
  #allocation0 [shape = 'u32[]', space=smem, size = 0x4, offset = 0x4, fixed_abs, tag = 'smem constant byte address 0x4 - core index']
  #allocation1 [shape = 'u32[144,128]{1,0:T(1,128)}', space=vmem, size = 0x12000, scoped, tag = 'internal scratch']
  %s0 = inlined_call_operand.vmem [shape: bf16[3,16,16], index: 0, kind: input, shape index: {}]
  %s1 = inlined_call_operand.vmem [shape: bf16[3,32,64], index: 1, kind: input, shape index: {}]
  %s2 = inlined_call_operand.vmem [shape: bf16[2,16,32], index: 2, kind: input, shape index: {}]
  %s3 = inlined_call_operand.vmem [shape: f32[2,16,64], index: 3, kind: output, shape index: {}]
  %s4 = sld [smem:[#allocation0]]
  $region45: #{cheb_conv_forward.1} parent=0
    _
  %s6 = ssub.s32 1, %s4
  %s7 = scalar_select 0, %s6, %s4
  loop: start=0, step=1, limit=4
  $region2: #{cheb_conv_forward.1} parent=0 // loop_pre_header
    _
  $region3: #{cheb_conv_forward.1} parent=0 // loop_header
    %s9 = sphi 0, %s13
    %p10 = scmp.ge.s32.totalorder %s9, 4
    %s17 = sphi 0, %s17
    %s19 = sphi 0, %s17
    %s20 = sphi 0, %s19
    %s34 = sphi 0, %s20
    %s38 = sphi 0, %s38
    %s40 = sphi 0, %s38
    %s41 = sphi 0, %s40
    %s55 = sphi 0, %s41
    %s61 = sphi 0, %s63
    %s64 = sphi 0, %s61
    %s65 = sphi 0, %s64
    %s81 = sphi 0, %s65
    %s87 = sphi 0, %s89
    %s90 = sphi 0, %s87
    %s91 = sphi 0, %s90
    %s107 = sphi 0, %s91
  $region4: #{cheb_conv_forward.1} parent=0 // loop_header_branch
    %12 = sbr.rel (%p10) target = $region8
  $region5: #{cheb_conv_forward.1} parent=0 // loop_body
    %s14 = ssub.s32 %s9, 1
    %s15 = ssub.s32 %s9, 2
    %s16 = sadd.s32 %s9, 1
    %s18 = sadd.s32 %s17, 1
    %p21 = scmp.eq.s32.totalorder %s9, 1
    %p22 = scmp.ne.s32.totalorder %s17, %s19
    %p23 = scmp.eq.s32.totalorder %s9, 0
    %p24 = por %p22, %p23
    %p25 = scmp.ne.s32.totalorder %s17, %s19
    %p26 = scmp.eq.s32.totalorder %s14, 1
    %p27 = por %p25, %p26
    %p28 = scmp.ne.s32.totalorder %s19, %s20
    %p29 = scmp.eq.s32.totalorder %s14, 0
    %p30 = por %p28, %p29
    %p31 = scmp.ne.s32.totalorder %s19, %s20
    %p32 = scmp.eq.s32.totalorder %s15, 1
    %p33 = por %p31, %p32
    %p35 = scmp.ne.s32.totalorder %s20, %s34
    %p36 = scmp.eq.s32.totalorder %s15, 0
    %p37 = por %p35, %p36
    %s39 = sadd.s32 %s38, 1
    %p42 = scmp.eq.s32.totalorder %s9, 1
    %p43 = scmp.ne.s32.totalorder %s38, %s40
    %p44 = scmp.eq.s32.totalorder %s9, 0
    %p45 = por %p43, %p44
    %p46 = scmp.ne.s32.totalorder %s38, %s40
    %p47 = scmp.eq.s32.totalorder %s14, 1
    %p48 = por %p46, %p47
    %p49 = scmp.ne.s32.totalorder %s40, %s41
    %p50 = scmp.eq.s32.totalorder %s14, 0
    %p51 = por %p49, %p50
    %p52 = scmp.ne.s32.totalorder %s40, %s41
    %p53 = scmp.eq.s32.totalorder %s15, 1
    %p54 = por %p52, %p53
    %p56 = scmp.ne.s32.totalorder %s41, %s55
    %p57 = scmp.eq.s32.totalorder %s15, 0
    %p58 = por %p56, %p57
    %s59 = ssub.s32 %s9, %s16
    %p60 = scmp.eq.s32.totalorder %s59, 0
    %s62 = sadd.s32 %s61, 1
    %s63 = scalar_select %p60, %s61, %s62
    %p66 = pneg %p60
    %p67 = scmp.eq.s32.totalorder %s9, 1
    %p68 = por %p66, %p67
    %p69 = scmp.ne.s32.totalorder %s61, %s64
    %p70 = scmp.eq.s32.totalorder %s9, 0
    %p71 = por %p69, %p70
    %p72 = scmp.ne.s32.totalorder %s61, %s64
    %p73 = scmp.eq.s32.totalorder %s14, 1
    %p74 = por %p72, %p73
    %p75 = scmp.ne.s32.totalorder %s64, %s65
    %p76 = scmp.eq.s32.totalorder %s14, 0
    %p77 = por %p75, %p76
    %p78 = scmp.ne.s32.totalorder %s64, %s65
    %p79 = scmp.eq.s32.totalorder %s15, 1
    %p80 = por %p78, %p79
    %p82 = scmp.ne.s32.totalorder %s65, %s81
    %p83 = scmp.eq.s32.totalorder %s15, 0
    %p84 = por %p82, %p83
    %s85 = ssub.s32 %s9, %s16
    %p86 = scmp.eq.s32.totalorder %s85, 0
    %s88 = sadd.s32 %s87, 1
    %s89 = scalar_select %p86, %s87, %s88
    %p92 = pneg %p86
    %p93 = scmp.eq.s32.totalorder %s9, 1
    %p94 = por %p92, %p93
    %p95 = scmp.ne.s32.totalorder %s87, %s90
    %p96 = scmp.eq.s32.totalorder %s9, 0
    %p97 = por %p95, %p96
    %p98 = scmp.ne.s32.totalorder %s87, %s90
    %p99 = scmp.eq.s32.totalorder %s14, 1
    %p100 = por %p98, %p99
    %p101 = scmp.ne.s32.totalorder %s90, %s91
    %p102 = scmp.eq.s32.totalorder %s14, 0
    %p103 = por %p101, %p102
    %p104 = scmp.ne.s32.totalorder %s90, %s91
    %p105 = scmp.eq.s32.totalorder %s15, 1
    %p106 = por %p104, %p105
    %p108 = scmp.ne.s32.totalorder %s91, %s107
    %p109 = scmp.eq.s32.totalorder %s15, 0
    %p110 = por %p108, %p109
    %p111 = scmp.le.s32.totalorder 1, %s9
    %p112 = scmp.lt.s32.totalorder %s9, 3
    %p113 = pnand %p111, %p112
    %p114 = pneg %p113
    // Predicated region
    $region9: #{cheb_conv_forward.1} parent=5 // pred_check
      _
    $region10: #{cheb_conv_forward.1} parent=5 // pred_check_branch
      %116 = sbr.rel (%p113) target = $region12
    $region11: #{cheb_conv_forward.1} parent=5 // pred_region
      %s117 = ssub.s32 %s9, 1
      // Predicated region
      $region13: #{cheb_conv_forward.1} parent=11 // pred_check
        %p118 = pneg %p30
      $region14: #{cheb_conv_forward.1} parent=11 // pred_check_branch
        %120 = sbr.rel (%p118) target = $region16
      $region15: #{cheb_conv_forward.1} parent=11 // pred_region
        _
      $region16: #{cheb_conv_forward.1} parent=11 // pred_fallthru
        _
      // Predicated region
      $region17: #{cheb_conv_forward.1} parent=11 // pred_check
        %p121 = pneg %p51
      $region18: #{cheb_conv_forward.1} parent=11 // pred_check_branch
        %123 = sbr.rel (%p121) target = $region20
      $region19: #{cheb_conv_forward.1} parent=11 // pred_region
        _
      $region20: #{cheb_conv_forward.1} parent=11 // pred_fallthru
        _
    $region12: #{cheb_conv_forward.1} parent=5 // pred_fallthru
      _
    %p124 = scmp.lt.s32.totalorder %s9, 2
    // Predicated region
    $region21: #{cheb_conv_forward.1} parent=5 // pred_check
      %p125 = pneg %p124
    $region22: #{cheb_conv_forward.1} parent=5 // pred_check_branch
      %127 = sbr.rel (%p125) target = $region24
    $region23: #{cheb_conv_forward.1} parent=5 // pred_region
      // Predicated region
      $region25: #{cheb_conv_forward.1} parent=23 // pred_check
        %p128 = pneg %p71
      $region26: #{cheb_conv_forward.1} parent=23 // pred_check_branch
        %130 = sbr.rel (%p128) target = $region28
      $region27: #{cheb_conv_forward.1} parent=23 // pred_region
        %p131 = scmp.lt.s32.totalorder %s9, 1
        %s132 = scalar_select %p131, %s9, 1
        %s133 = smul.addr %s132, 2
        %s134 = smul.addr %s133, 4
        %s135 = scalar_lea.vmem %s2, %s134
      $region28: #{cheb_conv_forward.1} parent=23 // pred_fallthru
        _
    $region24: #{cheb_conv_forward.1} parent=5 // pred_fallthru
      _
    %p136 = scmp.le.s32.totalorder 1, %s9
    %p137 = scmp.lt.s32.totalorder %s9, 3
    %p138 = pnand %p136, %p137
    %p139 = pneg %p138
    // Predicated region
    $region29: #{cheb_conv_forward.1} parent=5 // pred_check
      _
    $region30: #{cheb_conv_forward.1} parent=5 // pred_check_branch
      %141 = sbr.rel (%p138) target = $region32
    $region31: #{cheb_conv_forward.1} parent=5 // pred_region
      %s142 = ssub.s32 %s9, 1
      %p143 = pneg %p30
      %p144 = pneg %p27
      %p145 = pneg %p51
      %p146 = pneg %p48
      %p147 = scmp.lt.s32.totalorder %s14, 1
      %s148 = scalar_select %p147, %s14, 1
      %s149 = smul.addr %s148, 2
      %s150 = smul.addr %s149, 4
      %s151 = scalar_lea.vmem %s2, %s150
      %p152 = pneg %p77
      %p153 = pneg %p74
      %p154 = pneg %p103
      %p155 = pneg %p100
      %p156 = scmp.lt.s32.totalorder %s14, 1
      %s157 = scalar_select %p156, %s14, 1
      %s158 = smul.addr %s157, 2
      %s159 = smul.addr %s158, 8
      %s160 = scalar_lea.vmem %s3, %s159
      %p161 = scmp.lt.s32.totalorder %s14, 1
      %s162 = scalar_select %p161, %s14, 1
      %s163 = smul.addr %s162, 2
      %s164 = smul.addr %s163, 4
      %s165 = scalar_lea.vmem %s2, %s164
      %p166 = scmp.lt.s32.totalorder %s14, 1
      %s167 = scalar_select %p166, %s14, 1
      %s168 = smul.addr %s167, 2
      %s169 = smul.addr %s168, 8
      %s170 = scalar_lea.vmem %s3, %s169
      %v172 = vld [vmem:[%s165] sm:$0xf]
      %v173 = vld [vmem:[%s165 + $0x4] sm:$0xf]
      %v174 = vld [vmem:[%s0] sm:$0xf]
      %v175 = vld [vmem:[%s0 + $0x4] sm:$0xf]
      %v178 = vunpack.c.l.b16 %v174
      %v179 = vunpack.c.l.b16 %v175
      %v180 = vpack.c.b16 %v179, %v178
      %v183 = vunpack.c.l.b16 %v172
      %v184 = vunpack.c.l.b16 %v173
      %v185 = vpack.c.b16 %v184, %v183
      %vm187 = vcmask 130048
      %v189 = vsel %vm187, %v180, 0
      %191 = vmatprep.subr.bf16.mxu0 0
      %192 = vmatpush1.bf16.msra.mxu0 %v185
      %193 = vmatprep.subr.bf16.mxu0 0
      %194 = vmatpush1.bf16.msra.mxu0 0
      %195 = vmatprep.subr.bf16.mxu0 0
      %196 = vmatpush1.bf16.msra.mxu0 0
      %197 = vmatprep.subr.bf16.mxu0 0
      %198 = vmatpush1.bf16.msra.mxu0 0
      %199 = vmatprep.subr.bf16.mxu0 0
      %200 = vmatpush1.bf16.msra.mxu0 0
      %201 = vmatprep.subr.bf16.mxu0 0
      %202 = vmatpush1.bf16.msra.mxu0 0
      %203 = vmatprep.subr.bf16.mxu0 0
      %204 = vmatpush1.bf16.msra.mxu0 0
      %205 = vmatprep.subr.bf16.mxu0 0
      %206 = vmatpush1.bf16.msra.mxu0 0
      %207 = vmatprep.subr.bf16.mxu0 0
      %208 = vmatpush1.bf16.msra.mxu0 0
      %209 = vmatprep.subr.bf16.mxu0 0
      %210 = vmatpush1.bf16.msra.mxu0 0
      %211 = vmatprep.subr.bf16.mxu0 0
      %212 = vmatpush1.bf16.msra.mxu0 0
      %213 = vmatprep.subr.bf16.mxu0 0
      %214 = vmatpush1.bf16.msra.mxu0 0
      %215 = vmatprep.subr.bf16.mxu0 0
      %216 = vmatpush1.bf16.msra.mxu0 0
      %217 = vmatprep.subr.bf16.mxu0 0
      %218 = vmatpush1.bf16.msra.mxu0 0
      %219 = vmatprep.subr.bf16.mxu0 0
      %220 = vmatpush1.bf16.msra.mxu0 0
      %221 = vmatprep.subr.bf16.mxu0 0
      %222 = vmatpush1.bf16.msra.mxu0 0
      %223 = vmatprep.mubr.bf16.mxu0 0
      %224 = vmatmul.mubr.bf16.gmra.mrb[0].mxu0 %v189
      %v225 = vpop.f32.mrb[0].mxu0
      %v226 = vadd.f32 0.0, %v225
      %v227 = vpop.f32.mrb[0].mxu0
      %v228 = vpop.f32.mrb[0].mxu0
      %v229 = vadd.f32 0.0, %v228
      %v230 = vpop.f32.mrb[0].mxu0
      %231 = vdwg.mxu0
      %v232 = vpack.c.bf16 %v229, %v226
      %v233 = vld [vmem:[%s1] sm:$0xf]
      %v234 = vld [vmem:[%s1 + $0x4] sm:$0xf]
      %v235 = vld [vmem:[%s1 + $0x8] sm:$0xf]
      %v236 = vld [vmem:[%s1 + $0xc] sm:$0xf]
      %s237 = scalar_lea.vmem %s0, 8
      %v238 = vld [vmem:[%s237] sm:$0xf]
      %v239 = vld [vmem:[%s237 + $0x4] sm:$0xf]
      %v242 = vunpack.c.l.b16 %v238
      %v243 = vunpack.c.l.b16 %v239
      %v244 = vpack.c.b16 %v243, %v242
      %v246 = vsel %vm187, %v244, 0
      %248 = vmatprep.subr.bf16.mxu0 0
      %249 = vmatpush1.bf16.msra.mxu0 %v185
      %250 = vmatprep.subr.bf16.mxu0 0
      %251 = vmatpush1.bf16.msra.mxu0 0
      %252 = vmatprep.subr.bf16.mxu0 0
      %253 = vmatpush1.bf16.msra.mxu0 0
      %254 = vmatprep.subr.bf16.mxu0 0
      %255 = vmatpush1.bf16.msra.mxu0 0
      %256 = vmatprep.subr.bf16.mxu0 0
      %257 = vmatpush1.bf16.msra.mxu0 0
      %258 = vmatprep.subr.bf16.mxu0 0
      %259 = vmatpush1.bf16.msra.mxu0 0
      %260 = vmatprep.subr.bf16.mxu0 0
      %261 = vmatpush1.bf16.msra.mxu0 0
      %262 = vmatprep.subr.bf16.mxu0 0
      %263 = vmatpush1.bf16.msra.mxu0 0
      %264 = vmatprep.subr.bf16.mxu0 0
      %265 = vmatpush1.bf16.msra.mxu0 0
      %266 = vmatprep.subr.bf16.mxu0 0
      %267 = vmatpush1.bf16.msra.mxu0 0
      %268 = vmatprep.subr.bf16.mxu0 0
      %269 = vmatpush1.bf16.msra.mxu0 0
      %270 = vmatprep.subr.bf16.mxu0 0
      %271 = vmatpush1.bf16.msra.mxu0 0
      %272 = vmatprep.subr.bf16.mxu0 0
      %273 = vmatpush1.bf16.msra.mxu0 0
      %274 = vmatprep.subr.bf16.mxu0 0
      %275 = vmatpush1.bf16.msra.mxu0 0
      %276 = vmatprep.subr.bf16.mxu0 0
      %277 = vmatpush1.bf16.msra.mxu0 0
      %278 = vmatprep.subr.bf16.mxu0 0
      %279 = vmatpush1.bf16.msra.mxu0 0
      %280 = vmatprep.mubr.bf16.mxu0 0
      %281 = vmatmul.mubr.bf16.gmra.mrb[0].mxu0 %v246
      %v282 = vpop.f32.mrb[0].mxu0
      %v283 = vadd.f32 0.0, %v282
      %v284 = vpop.f32.mrb[0].mxu0
      %v285 = vpop.f32.mrb[0].mxu0
      %v286 = vadd.f32 0.0, %v285
      %v287 = vpop.f32.mrb[0].mxu0
      %288 = vdwg.mxu0
      %v289 = vpack.c.bf16 %v286, %v283
      %s290 = scalar_lea.vmem %s1, 16
      %v291 = vld [vmem:[%s290] sm:$0xf]
      %v292 = vld [vmem:[%s290 + $0x4] sm:$0xf]
      %v293 = vld [vmem:[%s290 + $0x8] sm:$0xf]
      %v294 = vld [vmem:[%s290 + $0xc] sm:$0xf]
      %v299 = vunpack.c.l.b16 %v291
      %v300 = vunpack.c.l.b16 %v292
      %v301 = vunpack.c.l.b16 %v293
      %v302 = vunpack.c.l.b16 %v294
      %v303 = vpack.c.b16 %v300, %v299
      %v304 = vpack.c.b16 %v302, %v301
      %vm307 = vcmask 261120
      %v309 = vsel %vm307, %v289, 0
      %311 = vmatprep.subr.bf16.mxu0 0
      %312 = vmatpush1.bf16.msra.mxu0 %v303
      %313 = vmatprep.subr.bf16.mxu0 0
      %314 = vmatpush1.bf16.msra.mxu0 %v304
      %315 = vmatprep.subr.bf16.mxu0 0
      %316 = vmatpush1.bf16.msra.mxu0 0
      %317 = vmatprep.subr.bf16.mxu0 0
      %318 = vmatpush1.bf16.msra.mxu0 0
      %319 = vmatprep.subr.bf16.mxu0 0
      %320 = vmatpush1.bf16.msra.mxu0 0
      %321 = vmatprep.subr.bf16.mxu0 0
      %322 = vmatpush1.bf16.msra.mxu0 0
      %323 = vmatprep.subr.bf16.mxu0 0
      %324 = vmatpush1.bf16.msra.mxu0 0
      %325 = vmatprep.subr.bf16.mxu0 0
      %326 = vmatpush1.bf16.msra.mxu0 0
      %327 = vmatprep.subr.bf16.mxu0 0
      %328 = vmatpush1.bf16.msra.mxu0 0
      %329 = vmatprep.subr.bf16.mxu0 0
      %330 = vmatpush1.bf16.msra.mxu0 0
      %331 = vmatprep.subr.bf16.mxu0 0
      %332 = vmatpush1.bf16.msra.mxu0 0
      %333 = vmatprep.subr.bf16.mxu0 0
      %334 = vmatpush1.bf16.msra.mxu0 0
      %335 = vmatprep.subr.bf16.mxu0 0
      %336 = vmatpush1.bf16.msra.mxu0 0
      %337 = vmatprep.subr.bf16.mxu0 0
      %338 = vmatpush1.bf16.msra.mxu0 0
      %339 = vmatprep.subr.bf16.mxu0 0
      %340 = vmatpush1.bf16.msra.mxu0 0
      %341 = vmatprep.subr.bf16.mxu0 0
      %342 = vmatpush1.bf16.msra.mxu0 0
      %343 = vmatprep.mubr.bf16.mxu0 0
      %344 = vmatmul.mubr.bf16.gmra.mrb[0].mxu0 %v309
      %v345 = vpop.f32.mrb[0].mxu0
      %v346 = vadd.f32 0.0, %v345
      %v347 = vpop.f32.mrb[0].mxu0
      %v348 = vpop.f32.mrb[0].mxu0
      %v349 = vadd.f32 0.0, %v348
      %v350 = vpop.f32.mrb[0].mxu0
      %351 = vdwg.mxu0
      %v356 = vunpack.c.l.b16 %v233
      %v357 = vunpack.c.l.b16 %v234
      %v358 = vunpack.c.l.b16 %v235
      %v359 = vunpack.c.l.b16 %v236
      %v360 = vpack.c.b16 %v357, %v356
      %v361 = vpack.c.b16 %v359, %v358
      %v365 = vsel %vm307, %v232, 0
      %367 = vmatprep.subr.bf16.mxu0 0
      %368 = vmatpush1.bf16.msra.mxu0 %v360
      %369 = vmatprep.subr.bf16.mxu0 0
      %370 = vmatpush1.bf16.msra.mxu0 %v361
      %371 = vmatprep.subr.bf16.mxu0 0
      %372 = vmatpush1.bf16.msra.mxu0 0
      %373 = vmatprep.subr.bf16.mxu0 0
      %374 = vmatpush1.bf16.msra.mxu0 0
      %375 = vmatprep.subr.bf16.mxu0 0
      %376 = vmatpush1.bf16.msra.mxu0 0
      %377 = vmatprep.subr.bf16.mxu0 0
      %378 = vmatpush1.bf16.msra.mxu0 0
      %379 = vmatprep.subr.bf16.mxu0 0
      %380 = vmatpush1.bf16.msra.mxu0 0
      %381 = vmatprep.subr.bf16.mxu0 0
      %382 = vmatpush1.bf16.msra.mxu0 0
      %383 = vmatprep.subr.bf16.mxu0 0
      %384 = vmatpush1.bf16.msra.mxu0 0
      %385 = vmatprep.subr.bf16.mxu0 0
      %386 = vmatpush1.bf16.msra.mxu0 0
      %387 = vmatprep.subr.bf16.mxu0 0
      %388 = vmatpush1.bf16.msra.mxu0 0
      %389 = vmatprep.subr.bf16.mxu0 0
      %390 = vmatpush1.bf16.msra.mxu0 0
      %391 = vmatprep.subr.bf16.mxu0 0
      %392 = vmatpush1.bf16.msra.mxu0 0
      %393 = vmatprep.subr.bf16.mxu0 0
      %394 = vmatpush1.bf16.msra.mxu0 0
      %395 = vmatprep.subr.bf16.mxu0 0
      %396 = vmatpush1.bf16.msra.mxu0 0
      %397 = vmatprep.subr.bf16.mxu0 0
      %398 = vmatpush1.bf16.msra.mxu0 0
      %399 = vmatprep.mubr.bf16.mxu0 0
      %400 = vmatmul.mubr.bf16.gmra.mrb[0].mxu0 %v365
      %v401 = vpop.f32.mrb[0].mxu0
      %v402 = vadd.f32 %v346, %v401
      %v403 = vpop.f32.mrb[0].mxu0
      %v404 = vpop.f32.mrb[0].mxu0
      %v405 = vadd.f32 %v349, %v404
      %v406 = vpop.f32.mrb[0].mxu0
      %407 = vdwg.mxu0
      %s408 = scalar_lea.vmem %s0, 16
      %v409 = vld [vmem:[%s408] sm:$0xf]
      %v410 = vld [vmem:[%s408 + $0x4] sm:$0xf]
      %v413 = vunpack.c.l.b16 %v409
      %v414 = vunpack.c.l.b16 %v410
      %v415 = vpack.c.b16 %v414, %v413
      %v417 = vsel %vm187, %v415, 0
      %419 = vmatprep.subr.bf16.mxu0 0
      %420 = vmatpush1.bf16.msra.mxu0 %v185
      %421 = vmatprep.subr.bf16.mxu0 0
      %422 = vmatpush1.bf16.msra.mxu0 0
      %423 = vmatprep.subr.bf16.mxu0 0
      %424 = vmatpush1.bf16.msra.mxu0 0
      %425 = vmatprep.subr.bf16.mxu0 0
      %426 = vmatpush1.bf16.msra.mxu0 0
      %427 = vmatprep.subr.bf16.mxu0 0
      %428 = vmatpush1.bf16.msra.mxu0 0
      %429 = vmatprep.subr.bf16.mxu0 0
      %430 = vmatpush1.bf16.msra.mxu0 0
      %431 = vmatprep.subr.bf16.mxu0 0
      %432 = vmatpush1.bf16.msra.mxu0 0
      %433 = vmatprep.subr.bf16.mxu0 0
      %434 = vmatpush1.bf16.msra.mxu0 0
      %435 = vmatprep.subr.bf16.mxu0 0
      %436 = vmatpush1.bf16.msra.mxu0 0
      %437 = vmatprep.subr.bf16.mxu0 0
      %438 = vmatpush1.bf16.msra.mxu0 0
      %439 = vmatprep.subr.bf16.mxu0 0
      %440 = vmatpush1.bf16.msra.mxu0 0
      %441 = vmatprep.subr.bf16.mxu0 0
      %442 = vmatpush1.bf16.msra.mxu0 0
      %443 = vmatprep.subr.bf16.mxu0 0
      %444 = vmatpush1.bf16.msra.mxu0 0
      %445 = vmatprep.subr.bf16.mxu0 0
      %446 = vmatpush1.bf16.msra.mxu0 0
      %447 = vmatprep.subr.bf16.mxu0 0
      %448 = vmatpush1.bf16.msra.mxu0 0
      %449 = vmatprep.subr.bf16.mxu0 0
      %450 = vmatpush1.bf16.msra.mxu0 0
      %451 = vmatprep.mubr.bf16.mxu0 0
      %452 = vmatmul.mubr.bf16.gmra.mrb[0].mxu0 %v417
      %v453 = vpop.f32.mrb[0].mxu0
      %v454 = vadd.f32 0.0, %v453
      %v455 = vpop.f32.mrb[0].mxu0
      %v456 = vpop.f32.mrb[0].mxu0
      %v457 = vadd.f32 0.0, %v456
      %v458 = vpop.f32.mrb[0].mxu0
      %459 = vdwg.mxu0
      %v460 = vpack.c.bf16 %v457, %v454
      %s461 = scalar_lea.vmem %s1, 32
      %v462 = vld [vmem:[%s461] sm:$0xf]
      %v463 = vld [vmem:[%s461 + $0x4] sm:$0xf]
      %v464 = vld [vmem:[%s461 + $0x8] sm:$0xf]
      %v465 = vld [vmem:[%s461 + $0xc] sm:$0xf]
      %v470 = vunpack.c.l.b16 %v462
      %v471 = vunpack.c.l.b16 %v463
      %v472 = vunpack.c.l.b16 %v464
      %v473 = vunpack.c.l.b16 %v465
      %v474 = vpack.c.b16 %v471, %v470
      %v475 = vpack.c.b16 %v473, %v472
      %v479 = vsel %vm307, %v460, 0
      %481 = vmatprep.subr.bf16.mxu0 0
      %482 = vmatpush1.bf16.msra.mxu0 %v474
      %483 = vmatprep.subr.bf16.mxu0 0
      %484 = vmatpush1.bf16.msra.mxu0 %v475
      %485 = vmatprep.subr.bf16.mxu0 0
      %486 = vmatpush1.bf16.msra.mxu0 0
      %487 = vmatprep.subr.bf16.mxu0 0
      %488 = vmatpush1.bf16.msra.mxu0 0
      %489 = vmatprep.subr.bf16.mxu0 0
      %490 = vmatpush1.bf16.msra.mxu0 0
      %491 = vmatprep.subr.bf16.mxu0 0
      %492 = vmatpush1.bf16.msra.mxu0 0
      %493 = vmatprep.subr.bf16.mxu0 0
      %494 = vmatpush1.bf16.msra.mxu0 0
      %495 = vmatprep.subr.bf16.mxu0 0
      %496 = vmatpush1.bf16.msra.mxu0 0
      %497 = vmatprep.subr.bf16.mxu0 0
      %498 = vmatpush1.bf16.msra.mxu0 0
      %499 = vmatprep.subr.bf16.mxu0 0
      %500 = vmatpush1.bf16.msra.mxu0 0
      %501 = vmatprep.subr.bf16.mxu0 0
      %502 = vmatpush1.bf16.msra.mxu0 0
      %503 = vmatprep.subr.bf16.mxu0 0
      %504 = vmatpush1.bf16.msra.mxu0 0
      %505 = vmatprep.subr.bf16.mxu0 0
      %506 = vmatpush1.bf16.msra.mxu0 0
      %507 = vmatprep.subr.bf16.mxu0 0
      %508 = vmatpush1.bf16.msra.mxu0 0
      %509 = vmatprep.subr.bf16.mxu0 0
      %510 = vmatpush1.bf16.msra.mxu0 0
      %511 = vmatprep.subr.bf16.mxu0 0
      %512 = vmatpush1.bf16.msra.mxu0 0
      %513 = vmatprep.mubr.bf16.mxu0 0
      %514 = vmatmul.mubr.bf16.gmra.mrb[0].mxu0 %v479
      %v515 = vpop.f32.mrb[0].mxu0
      %v516 = vadd.f32 0.0, %v515
      %v517 = vpop.f32.mrb[0].mxu0
      %v518 = vpop.f32.mrb[0].mxu0
      %v519 = vadd.f32 0.0, %v518
      %v520 = vpop.f32.mrb[0].mxu0
      %521 = vdwg.mxu0
      %v522 = vadd.f32 %v402, %v516
      %v523 = vadd.f32 %v405, %v519
      %v524 = vmax.f32 %v522, 0.0
      %v525 = vmax.f32 %v523, 0.0
      %vm526 = vcmask 523264
      %527 = vst.msk [vmem:[%s170] sm:$0xff] %vm526, %v524
      %528 = vst.msk [vmem:[%s170 + $0x8] sm:$0xff] %vm526, %v525
      %p529 = scmp.lt.s32.totalorder %s14, 1
      %s530 = scalar_select %p529, %s14, 1
      %s531 = smul.addr %s530, 2
      %s532 = smul.addr %s531, 8
      %s533 = scalar_lea.vmem %s3, %s532
      // Predicated region
      $region33: #{cheb_conv_forward.1} parent=31 // pred_check
        %p534 = pneg %p100
      $region34: #{cheb_conv_forward.1} parent=31 // pred_check_branch
        %536 = sbr.rel (%p534) target = $region36
      $region35: #{cheb_conv_forward.1} parent=31 // pred_region
        _
      $region36: #{cheb_conv_forward.1} parent=31 // pred_fallthru
        _
    $region32: #{cheb_conv_forward.1} parent=5 // pred_fallthru
      _
    %p537 = scmp.le.s32.totalorder 2, %s9
    // Predicated region
    $region37: #{cheb_conv_forward.1} parent=5 // pred_check
      %p538 = pneg %p537
    $region38: #{cheb_conv_forward.1} parent=5 // pred_check_branch
      %540 = sbr.rel (%p538) target = $region40
    $region39: #{cheb_conv_forward.1} parent=5 // pred_region
      %s541 = ssub.s32 %s9, 2
      // Predicated region
      $region41: #{cheb_conv_forward.1} parent=39 // pred_check
        %p542 = pneg %p106
      $region42: #{cheb_conv_forward.1} parent=39 // pred_check_branch
        %544 = sbr.rel (%p542) target = $region44
      $region43: #{cheb_conv_forward.1} parent=39 // pred_region
        %p545 = scmp.lt.s32.totalorder %s15, 1
        %s546 = scalar_select %p545, %s15, 1
        %s547 = smul.addr %s546, 2
        %s548 = smul.addr %s547, 8
        %s549 = scalar_lea.vmem %s3, %s548
      $region44: #{cheb_conv_forward.1} parent=39 // pred_fallthru
        _
    $region40: #{cheb_conv_forward.1} parent=5 // pred_fallthru
      _
  $region6: #{cheb_conv_forward.1} parent=0 // loop_footer
    %s13 = sadd.s32 1, %s9
  $region7: #{cheb_conv_forward.1} parent=0 // loop_footer_branch
    %8 = sbr.rel target = $region3
  $region8: #{cheb_conv_forward.1} parent=0 // loop_exit
    _

</llo_original>
